<compile_context>
chip_gen: v7x
topology: tpu7x:2x2x1
jax: 0.10.0
libtpu: 0.0.40
codegen_flags: <defaults>
</compile_context>

<pallas_src>
import functools

import jax
import jax.numpy as jnp
from jax import lax
from jax.experimental import pallas as pl
from jax.experimental.pallas import tpu as pltpu


# ---- GraphNCA channel bookkeeping (mirrors the PyTorch __init__) -----------
NUM_OPERATIONS = 3          # [add, subtract, multiply]
NUM_ACTIVATIONS = 2         # [relu, tanh]
NUM_HIDDEN_CHANNELS = 16    # default
NUM_CHANNELS = NUM_OPERATIONS + NUM_ACTIVATIONS + NUM_HIDDEN_CHANNELS + 2  # 23
UPDATE_HIDDEN = 32          # nn.Linear(num_channels, 32)


def _graph_nca_kernel(x_ref, e_ref,
                      wqkv_ref, w1_ref, b1_ref, w2_ref, b2_ref,
                      nodes_out_ref, edges_out_ref):
    """One graph's full forward pass on a VMEM-resident tile."""
    x = x_ref[...]                                   # (N, C) f32
    e = e_ref[...]                                   # (N, N) f32
    c = x.shape[-1]

    # --- EAGAttention: fused Q/K/V projection (one MXU push, N=3C) ----------
    qkv = jnp.dot(x, wqkv_ref[...], preferred_element_type=jnp.float32)  # (N, 3C)
    q = qkv[:, :c]            # Wq pre-scaled by 1/sqrt(C) at param prep
    k = qkv[:, c:2 * c]
    v = qkv[:, 2 * c:]

    # edge-biased logits; contract the channel dims directly (no k.T materialize)
    s = lax.dot_general(q, k,
                        dimension_numbers=(((1,), (1,)), ((), ())),
                        preferred_element_type=jnp.float32) + e          # (N, N)

    # row softmax (numerically stable); exact reciprocal keeps 1e-4 tolerance
    s_max = jnp.max(s, axis=-1, keepdims=True)
    p = jnp.exp(s - s_max)
    denom = jnp.sum(p, axis=-1, keepdims=True)
    attn = p * pl.reciprocal(denom, approx=False)

    feats = jnp.dot(attn, v, preferred_element_type=jnp.float32)         # (N, C)

    # --- update_net: Linear(C,32) -> ReLU -> Linear(32,C) --------------------
    h = jnp.dot(feats, w1_ref[...], preferred_element_type=jnp.float32) + b1_ref[...]
    h = jnp.maximum(h, 0.0)                                              # (N, 32)
    upd = jnp.dot(h, w2_ref[...], preferred_element_type=jnp.float32) + b2_ref[...]

    # --- residual node update + new edge matrix -------------------------------
    nodes_out_ref[...] = x + upd                                         # (N, C)
    edges_out_ref[...] = s                                               # (N, N)


@jax.jit
def graph_nca_forward_batched(x_b, e_b, fused_params):
    """x_b: (B, N, C) node features, e_b: (B, N, N) edge attributes."""
    b, n, c = x_b.shape
    wqkv, w1, b1, w2, b2 = fused_params

    def batch_spec(shape):
        # leading batch dim squeezed out of the kernel view
        return pl.BlockSpec((None,) + shape, lambda i: (i,) + (0,) * len(shape))

    def shared_spec(arr):
        nd = arr.ndim
        return pl.BlockSpec(arr.shape, lambda i, _nd=nd: (0,) * _nd)

    in_specs = [
        batch_spec((n, c)),          # x
        batch_spec((n, n)),          # edges
        shared_spec(wqkv),
        shared_spec(w1),
        shared_spec(b1),
        shared_spec(w2),
        shared_spec(b2),
    ]
    out_specs = (batch_spec((n, c)), batch_spec((n, n)))

    return pl.pallas_call(
        _graph_nca_kernel,
        grid=(b,),
        in_specs=in_specs,
        out_specs=out_specs,
        out_shape=(
            jax.ShapeDtypeStruct((b, n, c), jnp.float32),
            jax.ShapeDtypeStruct((b, n, n), jnp.float32),
        ),
        compiler_params=pltpu.CompilerParams(
            dimension_semantics=("parallel",)),   # v7x: 2 TCs split the graphs
    )(x_b, e_b, wqkv, w1, b1, w2, b2)


def graph_nca_forward(x, edge_mat, fused_params):
    """Single-graph forward (matches the PyTorch module's call signature)."""
    nodes_b, edges_b = graph_nca_forward_batched(x[None], edge_mat[None], fused_params)
    return nodes_b[0], edges_b[0]


def init_params(key, num_channels, hidden):
    """Deterministic synthetic parameter init (shapes per GraphNCA.__init__)."""
    ks = jax.random.split(key, 7)
    scale_c = 1.0 / jnp.sqrt(jnp.float32(num_channels))
    scale_h = 1.0 / jnp.sqrt(jnp.float32(hidden))
    wq = jax.random.normal(ks[0], (num_channels, num_channels), jnp.float32) * scale_c
    wk = jax.random.normal(ks[1], (num_channels, num_channels), jnp.float32) * scale_c
    wv = jax.random.normal(ks[2], (num_channels, num_channels), jnp.float32) * scale_c
    # update_net: Linear(C, 32) -> ReLU -> Linear(32, C); stored as (in, out)
    w1 = jax.random.normal(ks[3], (num_channels, hidden), jnp.float32) * scale_c
    b1 = jax.random.normal(ks[4], (1, hidden), jnp.float32) * 0.01
    w2 = jax.random.normal(ks[5], (hidden, num_channels), jnp.float32) * scale_h
    b2 = jax.random.normal(ks[6], (1, num_channels), jnp.float32) * 0.01
    return (wq, wk, wv, w1, b1, w2, b2)


def fuse_params(raw_params):
    """Fold 1/sqrt(C) into Wq and concat Wq|Wk|Wv -> (C, 3C) for one matmul."""
    wq, wk, wv, w1, b1, w2, b2 = raw_params
    c = wq.shape[0]
    scale = 1.0 / jnp.sqrt(jnp.float32(c))
    wqkv = jnp.concatenate([wq * scale, wk, wv], axis=1)
    return (wqkv, w1, b1, w2, b2)


def reference_forward(x, edge_mat, raw_params):
    """Pure-JAX reference of the same math (unfused), for a sanity check."""
    wq, wk, wv, w1, b1, w2, b2 = raw_params
    c = x.shape[-1]
    q, k, v = x @ wq, x @ wk, x @ wv
    s = (q @ k.T) / jnp.sqrt(jnp.float32(c)) + edge_mat
    attn = jax.nn.softmax(s, axis=-1)
    feats = attn @ v
    upd = jnp.maximum(feats @ w1 + b1, 0.0) @ w2 + b2
    return x + upd, s


if __name__ == "__main__":
    key = jax.random.PRNGKey(0)
    k_x, k_e, k_p = jax.random.split(key, 3)

    batch = 2                            # graphs processed in one pallas_call
    num_nodes = 8                        # small synthetic graphs
    x_b = jax.random.normal(k_x, (batch, num_nodes, NUM_CHANNELS), jnp.float32)
    e_b = jax.random.normal(k_e, (batch, num_nodes, num_nodes), jnp.float32) * 0.1

    raw_params = init_params(k_p, NUM_CHANNELS, UPDATE_HIDDEN)
    fused_params = fuse_params(raw_params)

    nodes_out, edges_out = graph_nca_forward_batched(x_b, e_b, fused_params)
    jax.block_until_ready((nodes_out, edges_out))

    assert nodes_out.shape == (batch, num_nodes, NUM_CHANNELS)
    assert edges_out.shape == (batch, num_nodes, num_nodes)

    # correctness check vs. pure-JAX reference, per graph
    for g in range(batch):
        ref_nodes, ref_edges = reference_forward(x_b[g], e_b[g], raw_params)
        assert jnp.allclose(nodes_out[g], ref_nodes, atol=1e-4, rtol=1e-4)
        assert jnp.allclose(edges_out[g], ref_edges, atol=1e-4, rtol=1e-4)

    # single-graph path (matches original forward() call shape) also works
    n1, e1 = graph_nca_forward(x_b[0], e_b[0], fused_params)
    jax.block_until_ready((n1, e1))
    assert jnp.allclose(n1, nodes_out[0], atol=1e-6)

    print("KERNEL_OK")
</pallas_src>

<mosaic_0001>
module attributes {stable_mosaic.version = 11 : i64} {
  func.func @_graph_nca_kernel(%arg0: i32, %arg1: memref<1x8x23xf32, #tpu.memory_space<vmem>>, %arg2: memref<1x8x8xf32, #tpu.memory_space<vmem>>, %arg3: memref<23x69xf32, #tpu.memory_space<vmem>>, %arg4: memref<23x32xf32, #tpu.memory_space<vmem>>, %arg5: memref<1x32xf32, #tpu.memory_space<vmem>>, %arg6: memref<32x23xf32, #tpu.memory_space<vmem>>, %arg7: memref<1x23xf32, #tpu.memory_space<vmem>>, %arg8: memref<1x8x23xf32, #tpu.memory_space<vmem>>, %arg9: memref<1x8x8xf32, #tpu.memory_space<vmem>>) attributes {dimension_semantics = [#tpu.dimension_semantics<parallel>], iteration_bounds = array<i64: 2>, scalar_prefetch = 0 : i64, scratch_operands = 0 : i64, tpu.core_type = #tpu.core_type<tc>, window_params = [{transform_indices = @transform_0, window_bounds = array<i64: 1, 8, 23>}, {transform_indices = @transform_1, window_bounds = array<i64: 1, 8, 8>}, {pipeline_mode = #tpu.pipeline_mode<synchronous>, transform_indices = @transform_2, window_bounds = array<i64: 23, 69>}, {pipeline_mode = #tpu.pipeline_mode<synchronous>, transform_indices = @transform_3, window_bounds = array<i64: 23, 32>}, {pipeline_mode = #tpu.pipeline_mode<synchronous>, transform_indices = @transform_4, window_bounds = array<i64: 1, 32>}, {pipeline_mode = #tpu.pipeline_mode<synchronous>, transform_indices = @transform_5, window_bounds = array<i64: 32, 23>}, {pipeline_mode = #tpu.pipeline_mode<synchronous>, transform_indices = @transform_6, window_bounds = array<i64: 1, 23>}, {transform_indices = @transform_7, window_bounds = array<i64: 1, 8, 23>}, {transform_indices = @transform_8, window_bounds = array<i64: 1, 8, 8>}]} {
    %c0 = arith.constant 0 : index
    %c0_0 = arith.constant 0 : index
    %c0_1 = arith.constant 0 : index
    %0 = vector.load %arg1[%c0, %c0_0, %c0_1] : memref<1x8x23xf32, #tpu.memory_space<vmem>>, vector<1x8x23xf32>
    %1 = vector.shape_cast %0 : vector<1x8x23xf32> to vector<8x23xf32>
    %c0_2 = arith.constant 0 : index
    %c0_3 = arith.constant 0 : index
    %c0_4 = arith.constant 0 : index
    %2 = vector.load %arg2[%c0_2, %c0_3, %c0_4] : memref<1x8x8xf32, #tpu.memory_space<vmem>>, vector<1x8x8xf32>
    %3 = vector.shape_cast %2 : vector<1x8x8xf32> to vector<8x8xf32>
    %c0_5 = arith.constant 0 : index
    %c0_6 = arith.constant 0 : index
    %4 = vector.load %arg3[%c0_5, %c0_6] : memref<23x69xf32, #tpu.memory_space<vmem>>, vector<23x69xf32>
    %cst = arith.constant dense<0.000000e+00> : vector<8x69xf32>
    %5 = tpu.matmul %1, %4, %cst {dimension_numbers = #tpu.dot_dimension_numbers<[1], [0], [0], [1], [0, 0, 1, 1], [], []>} : vector<8x23xf32>, vector<23x69xf32>, vector<8x69xf32> -> vector<8x69xf32>
    %6 = vector.extract_strided_slice %5 {offsets = [0, 0], sizes = [8, 23], strides = [1, 1]} : vector<8x69xf32> to vector<8x23xf32>
    %7 = vector.extract_strided_slice %5 {offsets = [0, 23], sizes = [8, 23], strides = [1, 1]} : vector<8x69xf32> to vector<8x23xf32>
    %8 = vector.extract_strided_slice %5 {offsets = [0, 46], sizes = [8, 23], strides = [1, 1]} : vector<8x69xf32> to vector<8x23xf32>
    %cst_7 = arith.constant dense<0.000000e+00> : vector<8x8xf32>
    %9 = tpu.matmul %6, %7, %cst_7 {dimension_numbers = #tpu.dot_dimension_numbers<[1], [1], [0], [0], [0, 0, 1, 0], [], []>} : vector<8x23xf32>, vector<8x23xf32>, vector<8x8xf32> -> vector<8x8xf32>
    %10 = arith.addf %9, %3 : vector<8x8xf32>
    %cst_8 = arith.constant dense<0xFF800000> : vector<8xf32>
    %11 = vector.multi_reduction <maximumf>, %10, %cst_8 [1] : vector<8x8xf32> to vector<8xf32>
    %12 = vector.shape_cast %11 : vector<8xf32> to vector<8x1xf32>
    %13 = vector.broadcast %12 : vector<8x1xf32> to vector<8x8xf32>
    %14 = arith.subf %10, %13 : vector<8x8xf32>
    %15 = math.exp %14 : vector<8x8xf32>
    %cst_9 = arith.constant dense<0.000000e+00> : vector<8xf32>
    %16 = vector.multi_reduction <add>, %15, %cst_9 [1] : vector<8x8xf32> to vector<8xf32>
    %17 = vector.shape_cast %16 : vector<8xf32> to vector<8x1xf32>
    %18 = tpu.reciprocal %17 : vector<8x1xf32> -> vector<8x1xf32>
    %19 = vector.broadcast %18 : vector<8x1xf32> to vector<8x8xf32>
    %20 = arith.mulf %15, %19 : vector<8x8xf32>
    %cst_10 = arith.constant dense<0.000000e+00> : vector<8x23xf32>
    %21 = tpu.matmul %20, %8, %cst_10 {dimension_numbers = #tpu.dot_dimension_numbers<[1], [0], [0], [1], [0, 0, 1, 1], [], []>} : vector<8x8xf32>, vector<8x23xf32>, vector<8x23xf32> -> vector<8x23xf32>
    %c0_11 = arith.constant 0 : index
    %c0_12 = arith.constant 0 : index
    %22 = vector.load %arg4[%c0_11, %c0_12] : memref<23x32xf32, #tpu.memory_space<vmem>>, vector<23x32xf32>
    %cst_13 = arith.constant dense<0.000000e+00> : vector<8x32xf32>
    %23 = tpu.matmul %21, %22, %cst_13 {dimension_numbers = #tpu.dot_dimension_numbers<[1], [0], [0], [1], [0, 0, 1, 1], [], []>} : vector<8x23xf32>, vector<23x32xf32>, vector<8x32xf32> -> vector<8x32xf32>
    %c0_14 = arith.constant 0 : index
    %c0_15 = arith.constant 0 : index
    %24 = vector.load %arg5[%c0_14, %c0_15] : memref<1x32xf32, #tpu.memory_space<vmem>>, vector<1x32xf32>
    %25 = vector.broadcast %24 : vector<1x32xf32> to vector<8x32xf32>
    %26 = arith.addf %23, %25 : vector<8x32xf32>
    %cst_16 = arith.constant 0.000000e+00 : f32
    %27 = vector.broadcast %cst_16 : f32 to vector<8x32xf32>
    %28 = arith.maximumf %26, %27 : vector<8x32xf32>
    %c0_17 = arith.constant 0 : index
    %c0_18 = arith.constant 0 : index
    %29 = vector.load %arg6[%c0_17, %c0_18] : memref<32x23xf32, #tpu.memory_space<vmem>>, vector<32x23xf32>
    %cst_19 = arith.constant dense<0.000000e+00> : vector<8x23xf32>
    %30 = tpu.matmul %28, %29, %cst_19 {dimension_numbers = #tpu.dot_dimension_numbers<[1], [0], [0], [1], [0, 0, 1, 1], [], []>} : vector<8x32xf32>, vector<32x23xf32>, vector<8x23xf32> -> vector<8x23xf32>
    %c0_20 = arith.constant 0 : index
    %c0_21 = arith.constant 0 : index
    %31 = vector.load %arg7[%c0_20, %c0_21] : memref<1x23xf32, #tpu.memory_space<vmem>>, vector<1x23xf32>
    %32 = vector.broadcast %31 : vector<1x23xf32> to vector<8x23xf32>
    %33 = arith.addf %30, %32 : vector<8x23xf32>
    %34 = arith.addf %1, %33 : vector<8x23xf32>
    %c0_22 = arith.constant 0 : index
    %c0_23 = arith.constant 0 : index
    %c0_24 = arith.constant 0 : index
    %35 = vector.load %arg8[%c0_22, %c0_23, %c0_24] : memref<1x8x23xf32, #tpu.memory_space<vmem>>, vector<1x8x23xf32>
    %36 = vector.shape_cast %35 : vector<1x8x23xf32> to vector<8x23xf32>
    %37 = vector.shape_cast %34 : vector<8x23xf32> to vector<1x8x23xf32>
    tpu.vector_store %arg8[%c0_22, %c0_23, %c0_24], %37 {strides = array<i32>} : memref<1x8x23xf32, #tpu.memory_space<vmem>>, vector<1x8x23xf32>,
    %c0_25 = arith.constant 0 : index
    %c0_26 = arith.constant 0 : index
    %c0_27 = arith.constant 0 : index
    %38 = vector.load %arg9[%c0_25, %c0_26, %c0_27] : memref<1x8x8xf32, #tpu.memory_space<vmem>>, vector<1x8x8xf32>
    %39 = vector.shape_cast %38 : vector<1x8x8xf32> to vector<8x8xf32>
    %40 = vector.shape_cast %10 : vector<8x8xf32> to vector<1x8x8xf32>
    tpu.vector_store %arg9[%c0_25, %c0_26, %c0_27], %40 {strides = array<i32>} : memref<1x8x8xf32, #tpu.memory_space<vmem>>, vector<1x8x8xf32>,
    return
  }
  func.func @transform_0(%arg0: i32) -> (i32, i32, i32) {
    %c0_i32 = arith.constant 0 : i32
    %c0_i32_0 = arith.constant 0 : i32
    %c0_i32_1 = arith.constant 0 : i32
    return %arg0, %c0_i32, %c0_i32_0 : i32, i32, i32
  }
  func.func @transform_1(%arg0: i32) -> (i32, i32, i32) {
    %c0_i32 = arith.constant 0 : i32
    %c0_i32_0 = arith.constant 0 : i32
    %c0_i32_1 = arith.constant 0 : i32
    return %arg0, %c0_i32, %c0_i32_0 : i32, i32, i32
  }
  func.func @transform_2(%arg0: i32) -> (i32, i32) {
    %c0_i32 = arith.constant 0 : i32
    %c0_i32_0 = arith.constant 0 : i32
    %c0_i32_1 = arith.constant 0 : i32
    return %c0_i32, %c0_i32_0 : i32, i32
  }
  func.func @transform_3(%arg0: i32) -> (i32, i32) {
    %c0_i32 = arith.constant 0 : i32
    %c0_i32_0 = arith.constant 0 : i32
    %c0_i32_1 = arith.constant 0 : i32
    return %c0_i32, %c0_i32_0 : i32, i32
  }
  func.func @transform_4(%arg0: i32) -> (i32, i32) {
    %c0_i32 = arith.constant 0 : i32
    %c0_i32_0 = arith.constant 0 : i32
    %c0_i32_1 = arith.constant 0 : i32
    return %c0_i32, %c0_i32_0 : i32, i32
  }
  func.func @transform_5(%arg0: i32) -> (i32, i32) {
    %c0_i32 = arith.constant 0 : i32
    %c0_i32_0 = arith.constant 0 : i32
    %c0_i32_1 = arith.constant 0 : i32
    return %c0_i32, %c0_i32_0 : i32, i32
  }
  func.func @transform_6(%arg0: i32) -> (i32, i32) {
    %c0_i32 = arith.constant 0 : i32
    %c0_i32_0 = arith.constant 0 : i32
    %c0_i32_1 = arith.constant 0 : i32
    return %c0_i32, %c0_i32_0 : i32, i32
  }
  func.func @transform_7(%arg0: i32) -> (i32, i32, i32) {
    %c0_i32 = arith.constant 0 : i32
    %c0_i32_0 = arith.constant 0 : i32
    %c0_i32_1 = arith.constant 0 : i32
    return %arg0, %c0_i32, %c0_i32_0 : i32, i32, i32
  }
  func.func @transform_8(%arg0: i32) -> (i32, i32, i32) {
    %c0_i32 = arith.constant 0 : i32
    %c0_i32_0 = arith.constant 0 : i32
    %c0_i32_1 = arith.constant 0 : i32
    return %arg0, %c0_i32, %c0_i32_0 : i32, i32, i32
  }
}

</mosaic_0001>

<llo_original>
// kernel: graph_nca_forward_batched.1
$region0: #{graph_nca_forward_batched.1}
  #allocation0 [shape = 'u32[]', space=smem, size = 0x4, offset = 0x4, fixed_abs, tag = 'smem constant byte address 0x4 - core index']
  #allocation1 [shape = 'u32[144,128]{1,0:T(1,128)}', space=vmem, size = 0x12000, scoped, tag = 'internal scratch']
  %s0 = inlined_call_operand.hbm [shape: f32[2,8,23], index: 0, kind: input, shape index: {}]
  %s1 = inlined_call_operand.hbm [shape: f32[2,8,8], index: 1, kind: input, shape index: {}]
  %s2 = inlined_call_operand.vmem [shape: f32[23,69], index: 2, kind: input, shape index: {}]
  %s3 = inlined_call_operand.vmem [shape: f32[23,32], index: 3, kind: input, shape index: {}]
  %s4 = inlined_call_operand.vmem [shape: f32[1,32], index: 4, kind: input, shape index: {}]
  %s5 = inlined_call_operand.vmem [shape: f32[32,23], index: 5, kind: input, shape index: {}]
  %s6 = inlined_call_operand.vmem [shape: f32[1,23], index: 6, kind: input, shape index: {}]
  %s7 = inlined_call_operand.hbm [shape: f32[2,8,23], index: 7, kind: output, shape index: {0}]
  %s8 = inlined_call_operand.hbm [shape: f32[2,8,8], index: 8, kind: output, shape index: {1}]
  %9 = xla_tuple %s7, %s8
  %s10 = sld [smem:[#allocation0]]
  $region77: #{graph_nca_forward_batched.1} parent=0
    _
  %s12 = ssub.s32 1, %s10
  %s13 = scalar_select 0, %s12, %s10
  $region1: #{graph_nca_forward_batched.1} parent=0
    #allocation2 [shape = 'u8[8192]{0}', space=vmem, size = 0x2000, scoped, tag = 'input window, operand 0']
    #allocation3 [shape = 's32[2]{0}', space=sflag, size = 0x8, scoped, tag = 'scoped memory for graph_nca_forward_batched.1']
    #allocation4 [shape = 's32[2]{0}', space=sflag, size = 0x8, scoped, tag = 'scoped memory for graph_nca_forward_batched.1']
    #allocation5 [shape = 'u8[8192]{0}', space=vmem, size = 0x2000, scoped, tag = 'input window, operand 1']
    #allocation6 [shape = 's32[2]{0}', space=sflag, size = 0x8, scoped, tag = 'scoped memory for graph_nca_forward_batched.1']
    #allocation7 [shape = 'u8[8192]{0}', space=vmem, size = 0x2000, scoped, tag = 'output window, operand 0']
    #allocation8 [shape = 'u8[8192]{0}', space=vmem, size = 0x2000, scoped, tag = 'output window, operand 1']
    #allocation9 [shape = 's32[2]{0}', space=sflag, size = 0x8, scoped, tag = 'scoped memory for graph_nca_forward_batched.1']
    %14 = vsyncpa [#allocation3], 0
    %s15 = scalar_lea.sflag [#allocation3], 1
    %16 = vsyncpa %s15, 0
    %17 = vsyncpa [#allocation6], 0
    %s18 = scalar_lea.sflag [#allocation6], 1
    %19 = vsyncpa %s18, 0
    %20 = vsyncpa [#allocation4], 0
    %s21 = scalar_lea.sflag [#allocation4], 1
    %22 = vsyncpa %s21, 0
    %23 = vsyncpa [#allocation9], 0
    %s24 = scalar_lea.sflag [#allocation9], 1
    %25 = vsyncpa %s24, 0
    loop: start=0, step=1, limit=4
    $region2: #{graph_nca_forward_batched.1} parent=1 // loop_pre_header
      _
    $region3: #{graph_nca_forward_batched.1} parent=1 // loop_header
      %s27 = sphi 0, %s31
      %p28 = scmp.ge.s32.totalorder %s27, 4
      %s37 = sphi 0, %s39
      %s40 = sphi 0, %s37
      %s41 = sphi 0, %s40
      %s57 = sphi 0, %s41
      %s63 = sphi 0, %s65
      %s66 = sphi 0, %s63
      %s67 = sphi 0, %s66
      %s83 = sphi 0, %s67
      %s87 = sphi 0, %s87
      %s89 = sphi 0, %s87
      %s90 = sphi 0, %s89
      %s104 = sphi 0, %s90
      %s108 = sphi 0, %s108
      %s110 = sphi 0, %s108
      %s111 = sphi 0, %s110
      %s125 = sphi 0, %s111
      %s129 = sphi 0, %s129
      %s131 = sphi 0, %s129
      %s132 = sphi 0, %s131
      %s146 = sphi 0, %s132
      %s150 = sphi 0, %s150
      %s152 = sphi 0, %s150
      %s153 = sphi 0, %s152
      %s167 = sphi 0, %s153
      %s171 = sphi 0, %s171
      %s173 = sphi 0, %s171
      %s174 = sphi 0, %s173
      %s188 = sphi 0, %s174
      %s194 = sphi 0, %s196
      %s197 = sphi 0, %s194
      %s198 = sphi 0, %s197
      %s214 = sphi 0, %s198
      %s220 = sphi 0, %s222
      %s223 = sphi 0, %s220
      %s224 = sphi 0, %s223
      %s240 = sphi 0, %s224
    $region4: #{graph_nca_forward_batched.1} parent=1 // loop_header_branch
      %30 = sbr.rel (%p28) target = $region8
    $region5: #{graph_nca_forward_batched.1} parent=1 // loop_body
      %s32 = ssub.s32 %s27, 1
      %s33 = ssub.s32 %s27, 2
      %s34 = sadd.s32 %s27, 1
      %s35 = ssub.s32 %s27, %s34
      %p36 = scmp.eq.s32.totalorder %s35, 0
      %s38 = sadd.s32 %s37, 1
      %s39 = scalar_select %p36, %s37, %s38
      %p42 = pneg %p36
      %p43 = scmp.eq.s32.totalorder %s27, 1
      %p44 = por %p42, %p43
      %p45 = scmp.ne.s32.totalorder %s37, %s40
      %p46 = scmp.eq.s32.totalorder %s27, 0
      %p47 = por %p45, %p46
      %p48 = scmp.ne.s32.totalorder %s37, %s40
      %p49 = scmp.eq.s32.totalorder %s32, 1
      %p50 = por %p48, %p49
      %p51 = scmp.ne.s32.totalorder %s40, %s41
      %p52 = scmp.eq.s32.totalorder %s32, 0
      %p53 = por %p51, %p52
      %p54 = scmp.ne.s32.totalorder %s40, %s41
      %p55 = scmp.eq.s32.totalorder %s33, 1
      %p56 = por %p54, %p55
      %p58 = scmp.ne.s32.totalorder %s41, %s57
      %p59 = scmp.eq.s32.totalorder %s33, 0
      %p60 = por %p58, %p59
      %s61 = ssub.s32 %s27, %s34
      %p62 = scmp.eq.s32.totalorder %s61, 0
      %s64 = sadd.s32 %s63, 1
      %s65 = scalar_select %p62, %s63, %s64
      %p68 = pneg %p62
      %p69 = scmp.eq.s32.totalorder %s27, 1
      %p70 = por %p68, %p69
      %p71 = scmp.ne.s32.totalorder %s63, %s66
      %p72 = scmp.eq.s32.totalorder %s27, 0
      %p73 = por %p71, %p72
      %p74 = scmp.ne.s32.totalorder %s63, %s66
      %p75 = scmp.eq.s32.totalorder %s32, 1
      %p76 = por %p74, %p75
      %p77 = scmp.ne.s32.totalorder %s66, %s67
      %p78 = scmp.eq.s32.totalorder %s32, 0
      %p79 = por %p77, %p78
      %p80 = scmp.ne.s32.totalorder %s66, %s67
      %p81 = scmp.eq.s32.totalorder %s33, 1
      %p82 = por %p80, %p81
      %p84 = scmp.ne.s32.totalorder %s67, %s83
      %p85 = scmp.eq.s32.totalorder %s33, 0
      %p86 = por %p84, %p85
      %s88 = sadd.s32 %s87, 1
      %p91 = scmp.eq.s32.totalorder %s27, 1
      %p92 = scmp.ne.s32.totalorder %s87, %s89
      %p93 = scmp.eq.s32.totalorder %s27, 0
      %p94 = por %p92, %p93
      %p95 = scmp.ne.s32.totalorder %s87, %s89
      %p96 = scmp.eq.s32.totalorder %s32, 1
      %p97 = por %p95, %p96
      %p98 = scmp.ne.s32.totalorder %s89, %s90
      %p99 = scmp.eq.s32.totalorder %s32, 0
      %p100 = por %p98, %p99
      %p101 = scmp.ne.s32.totalorder %s89, %s90
      %p102 = scmp.eq.s32.totalorder %s33, 1
      %p103 = por %p101, %p102
      %p105 = scmp.ne.s32.totalorder %s90, %s104
      %p106 = scmp.eq.s32.totalorder %s33, 0
      %p107 = por %p105, %p106
      %s109 = sadd.s32 %s108, 1
      %p112 = scmp.eq.s32.totalorder %s27, 1
      %p113 = scmp.ne.s32.totalorder %s108, %s110
      %p114 = scmp.eq.s32.totalorder %s27, 0
      %p115 = por %p113, %p114
      %p116 = scmp.ne.s32.totalorder %s108, %s110
      %p117 = scmp.eq.s32.totalorder %s32, 1
      %p118 = por %p116, %p117
      %p119 = scmp.ne.s32.totalorder %s110, %s111
      %p120 = scmp.eq.s32.totalorder %s32, 0
      %p121 = por %p119, %p120
      %p122 = scmp.ne.s32.totalorder %s110, %s111
      %p123 = scmp.eq.s32.totalorder %s33, 1
      %p124 = por %p122, %p123
      %p126 = scmp.ne.s32.totalorder %s111, %s125
      %p127 = scmp.eq.s32.totalorder %s33, 0
      %p128 = por %p126, %p127
      %s130 = sadd.s32 %s129, 1
      %p133 = scmp.eq.s32.totalorder %s27, 1
      %p134 = scmp.ne.s32.totalorder %s129, %s131
      %p135 = scmp.eq.s32.totalorder %s27, 0
      %p136 = por %p134, %p135
      %p137 = scmp.ne.s32.totalorder %s129, %s131
      %p138 = scmp.eq.s32.totalorder %s32, 1
      %p139 = por %p137, %p138
      %p140 = scmp.ne.s32.totalorder %s131, %s132
      %p141 = scmp.eq.s32.totalorder %s32, 0
      %p142 = por %p140, %p141
      %p143 = scmp.ne.s32.totalorder %s131, %s132
      %p144 = scmp.eq.s32.totalorder %s33, 1
      %p145 = por %p143, %p144
      %p147 = scmp.ne.s32.totalorder %s132, %s146
      %p148 = scmp.eq.s32.totalorder %s33, 0
      %p149 = por %p147, %p148
      %s151 = sadd.s32 %s150, 1
      %p154 = scmp.eq.s32.totalorder %s27, 1
      %p155 = scmp.ne.s32.totalorder %s150, %s152
      %p156 = scmp.eq.s32.totalorder %s27, 0
      %p157 = por %p155, %p156
      %p158 = scmp.ne.s32.totalorder %s150, %s152
      %p159 = scmp.eq.s32.totalorder %s32, 1
      %p160 = por %p158, %p159
      %p161 = scmp.ne.s32.totalorder %s152, %s153
      %p162 = scmp.eq.s32.totalorder %s32, 0
      %p163 = por %p161, %p162
      %p164 = scmp.ne.s32.totalorder %s152, %s153
      %p165 = scmp.eq.s32.totalorder %s33, 1
      %p166 = por %p164, %p165
      %p168 = scmp.ne.s32.totalorder %s153, %s167
      %p169 = scmp.eq.s32.totalorder %s33, 0
      %p170 = por %p168, %p169
      %s172 = sadd.s32 %s171, 1
      %p175 = scmp.eq.s32.totalorder %s27, 1
      %p176 = scmp.ne.s32.totalorder %s171, %s173
      %p177 = scmp.eq.s32.totalorder %s27, 0
      %p178 = por %p176, %p177
      %p179 = scmp.ne.s32.totalorder %s171, %s173
      %p180 = scmp.eq.s32.totalorder %s32, 1
      %p181 = por %p179, %p180
      %p182 = scmp.ne.s32.totalorder %s173, %s174
      %p183 = scmp.eq.s32.totalorder %s32, 0
      %p184 = por %p182, %p183
      %p185 = scmp.ne.s32.totalorder %s173, %s174
      %p186 = scmp.eq.s32.totalorder %s33, 1
      %p187 = por %p185, %p186
      %p189 = scmp.ne.s32.totalorder %s174, %s188
      %p190 = scmp.eq.s32.totalorder %s33, 0
      %p191 = por %p189, %p190
      %s192 = ssub.s32 %s27, %s34
      %p193 = scmp.eq.s32.totalorder %s192, 0
      %s195 = sadd.s32 %s194, 1
      %s196 = scalar_select %p193, %s194, %s195
      %p199 = pneg %p193
      %p200 = scmp.eq.s32.totalorder %s27, 1
      %p201 = por %p199, %p200
      %p202 = scmp.ne.s32.totalorder %s194, %s197
      %p203 = scmp.eq.s32.totalorder %s27, 0
      %p204 = por %p202, %p203
      %p205 = scmp.ne.s32.totalorder %s194, %s197
      %p206 = scmp.eq.s32.totalorder %s32, 1
      %p207 = por %p205, %p206
      %p208 = scmp.ne.s32.totalorder %s197, %s198
      %p209 = scmp.eq.s32.totalorder %s32, 0
      %p210 = por %p208, %p209
      %p211 = scmp.ne.s32.totalorder %s197, %s198
      %p212 = scmp.eq.s32.totalorder %s33, 1
      %p213 = por %p211, %p212
      %p215 = scmp.ne.s32.totalorder %s198, %s214
      %p216 = scmp.eq.s32.totalorder %s33, 0
      %p217 = por %p215, %p216
      %s218 = ssub.s32 %s27, %s34
      %p219 = scmp.eq.s32.totalorder %s218, 0
      %s221 = sadd.s32 %s220, 1
      %s222 = scalar_select %p219, %s220, %s221
      %p225 = pneg %p219
      %p226 = scmp.eq.s32.totalorder %s27, 1
      %p227 = por %p225, %p226
      %p228 = scmp.ne.s32.totalorder %s220, %s223
      %p229 = scmp.eq.s32.totalorder %s27, 0
      %p230 = por %p228, %p229
      %p231 = scmp.ne.s32.totalorder %s220, %s223
      %p232 = scmp.eq.s32.totalorder %s32, 1
      %p233 = por %p231, %p232
      %p234 = scmp.ne.s32.totalorder %s223, %s224
      %p235 = scmp.eq.s32.totalorder %s32, 0
      %p236 = por %p234, %p235
      %p237 = scmp.ne.s32.totalorder %s223, %s224
      %p238 = scmp.eq.s32.totalorder %s33, 1
      %p239 = por %p237, %p238
      %p241 = scmp.ne.s32.totalorder %s224, %s240
      %p242 = scmp.eq.s32.totalorder %s33, 0
      %p243 = por %p241, %p242
      %p244 = scmp.le.s32.totalorder 1, %s27
      %p245 = scmp.lt.s32.totalorder %s27, 3
      %p246 = pnand %p244, %p245
      %p247 = pneg %p246
      // Predicated region
      $region9: #{graph_nca_forward_batched.1} parent=5 // pred_check
        _
      $region10: #{graph_nca_forward_batched.1} parent=5 // pred_check_branch
        %249 = sbr.rel (%p246) target = $region12
      $region11: #{graph_nca_forward_batched.1} parent=5 // pred_region
        %s250 = ssub.s32 %s27, 1
        // Predicated region
        $region13: #{graph_nca_forward_batched.1} parent=11 // pred_check
          %p251 = pneg %p100
        $region14: #{graph_nca_forward_batched.1} parent=11 // pred_check_branch
          %253 = sbr.rel (%p251) target = $region16
        $region15: #{graph_nca_forward_batched.1} parent=11 // pred_region
          _
        $region16: #{graph_nca_forward_batched.1} parent=11 // pred_fallthru
          _
        // Predicated region
        $region17: #{graph_nca_forward_batched.1} parent=11 // pred_check
          %p254 = pneg %p121
        $region18: #{graph_nca_forward_batched.1} parent=11 // pred_check_branch
          %256 = sbr.rel (%p254) target = $region20
        $region19: #{graph_nca_forward_batched.1} parent=11 // pred_region
          _
        $region20: #{graph_nca_forward_batched.1} parent=11 // pred_fallthru
          _
        // Predicated region
        $region21: #{graph_nca_forward_batched.1} parent=11 // pred_check
          %p257 = pneg %p142
        $region22: #{graph_nca_forward_batched.1} parent=11 // pred_check_branch
          %259 = sbr.rel (%p257) target = $region24
        $region23: #{graph_nca_forward_batched.1} parent=11 // pred_region
          _
        $region24: #{graph_nca_forward_batched.1} parent=11 // pred_fallthru
          _
        // Predicated region
        $region25: #{graph_nca_forward_batched.1} parent=11 // pred_check
          %p260 = pneg %p163
        $region26: #{graph_nca_forward_batched.1} parent=11 // pred_check_branch
          %262 = sbr.rel (%p260) target = $region28
        $region27: #{graph_nca_forward_batched.1} parent=11 // pred_region
          _
        $region28: #{graph_nca_forward_batched.1} parent=11 // pred_fallthru
          _
        // Predicated region
        $region29: #{graph_nca_forward_batched.1} parent=11 // pred_check
          %p263 = pneg %p184
        $region30: #{graph_nca_forward_batched.1} parent=11 // pred_check_branch
          %265 = sbr.rel (%p263) target = $region32
        $region31: #{graph_nca_forward_batched.1} parent=11 // pred_region
          _
        $region32: #{graph_nca_forward_batched.1} parent=11 // pred_fallthru
          _
      $region12: #{graph_nca_forward_batched.1} parent=5 // pred_fallthru
        _
      %p266 = scmp.lt.s32.totalorder %s27, 2
      // Predicated region
      $region33: #{graph_nca_forward_batched.1} parent=5 // pred_check
        %p267 = pneg %p266
      $region34: #{graph_nca_forward_batched.1} parent=5 // pred_check_branch
        %269 = sbr.rel (%p267) target = $region36
      $region35: #{graph_nca_forward_batched.1} parent=5 // pred_region
        // Predicated region
        $region37: #{graph_nca_forward_batched.1} parent=35 // pred_check
          %p270 = pneg %p47
        $region38: #{graph_nca_forward_batched.1} parent=35 // pred_check_branch
          %272 = sbr.rel (%p270) target = $region40
        $region39: #{graph_nca_forward_batched.1} parent=35 // pred_region
          %s273 = sand.u32 %s37, 1
          %s274 = scalar_lea.sflag [#allocation3], %s273
          %s275 = sand.u32 %s37, 1
          %s276 = smul.addr %s275, 8
          %s277 = scalar_lea.vmem [#allocation2], %s276
          %s279 = ssub.s32 128, 128
          %280 = vsyncadd %s274, %s279
          %s281 = smul.addr %s27, 128
          %s282 = scalar_lea.hbm %s0, %s281
          %s284 = sshll.u32 %s277, 4
          %s285 = int_to_ptr.vmem [resolvable:$true] %s284
          %287 = dma.hbm_to_vmem [thread:$0]  %s282, 128, %s285, %s274
        $region40: #{graph_nca_forward_batched.1} parent=35 // pred_fallthru
          _
        // Predicated region
        $region41: #{graph_nca_forward_batched.1} parent=35 // pred_check
          %p288 = pneg %p73
        $region42: #{graph_nca_forward_batched.1} parent=35 // pred_check_branch
          %290 = sbr.rel (%p288) target = $region44
        $region43: #{graph_nca_forward_batched.1} parent=35 // pred_region
          %s291 = sand.u32 %s63, 1
          %s292 = scalar_lea.sflag [#allocation6], %s291
          %s293 = sand.u32 %s63, 1
          %s294 = smul.addr %s293, 8
          %s295 = scalar_lea.vmem [#allocation5], %s294
          %s297 = ssub.s32 128, 128
          %298 = vsyncadd %s292, %s297
          %s299 = smul.addr %s27, 128
          %s300 = scalar_lea.hbm %s1, %s299
          %s302 = sshll.u32 %s295, 4
          %s303 = int_to_ptr.vmem [resolvable:$true] %s302
          %305 = dma.hbm_to_vmem [thread:$0]  %s300, 128, %s303, %s292
        $region44: #{graph_nca_forward_batched.1} parent=35 // pred_fallthru
          _
      $region36: #{graph_nca_forward_batched.1} parent=5 // pred_fallthru
        _
      %p306 = scmp.le.s32.totalorder 1, %s27
      %p307 = scmp.lt.s32.totalorder %s27, 3
      %p308 = pnand %p306, %p307
      %p309 = pneg %p308
      // Predicated region
      $region45: #{graph_nca_forward_batched.1} parent=5 // pred_check
        _
      $region46: #{graph_nca_forward_batched.1} parent=5 // pred_check_branch
        %311 = sbr.rel (%p308) target = $region48
      $region47: #{graph_nca_forward_batched.1} parent=5 // pred_region
        %s312 = ssub.s32 %s27, 1
        %s313 = sand.u32 %s40, 1
        %s314 = scalar_lea.sflag [#allocation3], %s313
        %s315 = sand.u32 %s40, 1
        %s316 = smul.addr %s315, 8
        %s317 = scalar_lea.vmem [#allocation2], %s316
        // Predicated region
        $region49: #{graph_nca_forward_batched.1} parent=47 // pred_check
          %p318 = pneg %p53
        $region50: #{graph_nca_forward_batched.1} parent=47 // pred_check_branch
          %320 = sbr.rel (%p318) target = $region52
        $region51: #{graph_nca_forward_batched.1} parent=47 // pred_region
          %321 = dma.done %s314, 128
        $region52: #{graph_nca_forward_batched.1} parent=47 // pred_fallthru
          _
        %s322 = sand.u32 %s66, 1
        %s323 = scalar_lea.sflag [#allocation6], %s322
        %s324 = sand.u32 %s66, 1
        %s325 = smul.addr %s324, 8
        %s326 = scalar_lea.vmem [#allocation5], %s325
        // Predicated region
        $region53: #{graph_nca_forward_batched.1} parent=47 // pred_check
          %p327 = pneg %p79
        $region54: #{graph_nca_forward_batched.1} parent=47 // pred_check_branch
          %329 = sbr.rel (%p327) target = $region56
        $region55: #{graph_nca_forward_batched.1} parent=47 // pred_region
          %330 = dma.done %s323, 128
        $region56: #{graph_nca_forward_batched.1} parent=47 // pred_fallthru
          _
        %s331 = sand.u32 %s40, 1
        %s332 = scalar_lea.sflag [#allocation3], %s331
        %s333 = sand.u32 %s40, 1
        %s334 = smul.addr %s333, 8
        %s335 = scalar_lea.vmem [#allocation2], %s334
        %p336 = pneg %p53
        %p337 = pneg %p50
        %s338 = sand.u32 %s66, 1
        %s339 = scalar_lea.sflag [#allocation6], %s338
        %s340 = sand.u32 %s66, 1
        %s341 = smul.addr %s340, 8
        %s342 = scalar_lea.vmem [#allocation5], %s341
        %p343 = pneg %p79
        %p344 = pneg %p76
        %p345 = pneg %p100
        %p346 = pneg %p97
        %p347 = pneg %p121
        %p348 = pneg %p118
        %p349 = pneg %p142
        %p350 = pneg %p139
        %p351 = pneg %p163
        %p352 = pneg %p160
        %p353 = pneg %p184
        %p354 = pneg %p181
        %p355 = pneg %p210
        %p356 = pneg %p207
        %s357 = sand.u32 %s197, 1
        %s358 = scalar_lea.sflag [#allocation4], %s357
        %s359 = sand.u32 %s197, 1
        %s360 = smul.addr %s359, 8
        %s361 = scalar_lea.vmem [#allocation7], %s360
        %p362 = pneg %p236
        %p363 = pneg %p233
        %s364 = sand.u32 %s223, 1
        %s365 = scalar_lea.sflag [#allocation9], %s364
        %s366 = sand.u32 %s223, 1
        %s367 = smul.addr %s366, 8
        %s368 = scalar_lea.vmem [#allocation8], %s367
        %v369 = vld [vmem:[%s317] sm:$0xff]
        %v370 = vld [vmem:[%s326] sm:$0xff]
        %v371 = vld [vmem:[%s2] sm:$0xff]
        %v372 = vld [vmem:[%s2 + $0x8] sm:$0xff]
        %v373 = vld [vmem:[%s2 + $0x10] sm:$0x7f]
        %vm374 = vcmask 187392
        %v376 = vsel %vm374, %v369, 0
        %vm378 = vcmask 1046528
        %v380 = vsel %vm378, %v373, 0
        %382 = vmatprep.subr.mxu0 0.0
        %383 = vmatpush1.msra.mxu0 %v371
        %384 = vmatprep.subr.mxu0 0.0
        %385 = vmatpush1.msra.mxu0 %v372
        %386 = vmatprep.subr.mxu0 0.0
        %387 = vmatpush1.msra.mxu0 %v380
        %388 = vmatprep.subr.mxu0 0.0
        %389 = vmatpush1.msra.mxu0 0.0
        %390 = vmatprep.subr.mxu0 0.0
        %391 = vmatpush1.msra.mxu0 0.0
        %392 = vmatprep.subr.mxu0 0.0
        %393 = vmatpush1.msra.mxu0 0.0
        %394 = vmatprep.subr.mxu0 0.0
        %395 = vmatpush1.msra.mxu0 0.0
        %396 = vmatprep.subr.mxu0 0.0
        %397 = vmatpush1.msra.mxu0 0.0
        %398 = vmatprep.subr.mxu0 0.0
        %399 = vmatpush1.msra.mxu0 0.0
        %400 = vmatprep.subr.mxu0 0.0
        %401 = vmatpush1.msra.mxu0 0.0
        %402 = vmatprep.subr.mxu0 0.0
        %403 = vmatpush1.msra.mxu0 0.0
        %404 = vmatprep.subr.mxu0 0.0
        %405 = vmatpush1.msra.mxu0 0.0
        %406 = vmatprep.subr.mxu0 0.0
        %407 = vmatpush1.msra.mxu0 0.0
        %408 = vmatprep.subr.mxu0 0.0
        %409 = vmatpush1.msra.mxu0 0.0
        %410 = vmatprep.subr.mxu0 0.0
        %411 = vmatpush1.msra.mxu0 0.0
        %412 = vmatprep.subr.mxu0 0.0
        %413 = vmatpush1.msra.mxu0 0.0
        %414 = vmatprep.subr.mxu0 0.0
        %415 = vmatpush1.msra.mxu0 0.0
        %416 = vmatprep.subr.mxu0 0.0
        %417 = vmatpush1.msra.mxu0 0.0
        %418 = vmatprep.subr.mxu0 0.0
        %419 = vmatpush1.msra.mxu0 0.0
        %420 = vmatprep.subr.mxu0 0.0
        %421 = vmatpush1.msra.mxu0 0.0
        %422 = vmatprep.subr.mxu0 0.0
        %423 = vmatpush1.msra.mxu0 0.0
        %424 = vmatprep.subr.mxu0 0.0
        %425 = vmatpush1.msra.mxu0 0.0
        %426 = vmatprep.subr.mxu0 0.0
        %427 = vmatpush1.msra.mxu0 0.0
        %428 = vmatprep.subr.mxu0 0.0
        %429 = vmatpush1.msra.mxu0 0.0
        %430 = vmatprep.subr.mxu0 0.0
        %431 = vmatpush1.msra.mxu0 0.0
        %432 = vmatprep.subr.mxu0 0.0
        %433 = vmatpush1.msra.mxu0 0.0
        %434 = vmatprep.subr.mxu0 0.0
        %435 = vmatpush1.msra.mxu0 0.0
        %436 = vmatprep.subr.mxu0 0.0
        %437 = vmatpush1.msra.mxu0 0.0
        %438 = vmatprep.subr.mxu0 0.0
        %439 = vmatpush1.msra.mxu0 0.0
        %440 = vmatprep.subr.mxu0 0.0
        %441 = vmatpush1.msra.mxu0 0.0
        %442 = vmatprep.subr.mxu0 0.0
        %443 = vmatpush1.msra.mxu0 0.0
        %444 = vmatprep.subr.mxu0 0.0
        %445 = vmatpush1.msra.mxu0 0.0
        %446 = vmatprep.mubr.f32.mxu0 0.0
        %447 = vmatmul.mubr.f32.gmra.mrb[0].mxu0 %v376
        %v448 = vpop.f32.mrb[0].mxu0
        %v449 = vadd.f32 0.0, %v448
        %v450 = vpop.f32.mrb[0].mxu0
        %451 = vdwg.mxu0
        %453 = vrot.lane.b32.xlu0 %v449, 105
        %v454 = vpop.permute.xlu0 %453
        %v455 = vsel %vm374, %v449, 0
        %v457 = vsel %vm374, %v454, 0
        %459 = vmatprep.subr.mxu0 0.0
        %460 = vmatpush1.xpose.msra.mxu0 %v457
        %461 = vmatprep.subr.mxu0 0.0
        %462 = vmatpush1.xpose.msra.mxu0 0.0
        %463 = vmatprep.subr.mxu0 0.0
        %464 = vmatpush1.xpose.msra.mxu0 0.0
        %465 = vmatprep.subr.mxu0 0.0
        %466 = vmatpush1.xpose.msra.mxu0 0.0
        %467 = vmatprep.subr.mxu0 0.0
        %468 = vmatpush1.xpose.msra.mxu0 0.0
        %469 = vmatprep.subr.mxu0 0.0
        %470 = vmatpush1.xpose.msra.mxu0 0.0
        %471 = vmatprep.subr.mxu0 0.0
        %472 = vmatpush1.xpose.msra.mxu0 0.0
        %473 = vmatprep.subr.mxu0 0.0
        %474 = vmatpush1.xpose.msra.mxu0 0.0
        %475 = vmatprep.subr.mxu0 0.0
        %476 = vmatpush1.xpose.msra.mxu0 0.0
        %477 = vmatprep.subr.mxu0 0.0
        %478 = vmatpush1.xpose.msra.mxu0 0.0
        %479 = vmatprep.subr.mxu0 0.0
        %480 = vmatpush1.xpose.msra.mxu0 0.0
        %481 = vmatprep.subr.mxu0 0.0
        %482 = vmatpush1.xpose.msra.mxu0 0.0
        %483 = vmatprep.subr.mxu0 0.0
        %484 = vmatpush1.xpose.msra.mxu0 0.0
        %485 = vmatprep.subr.mxu0 0.0
        %486 = vmatpush1.xpose.msra.mxu0 0.0
        %487 = vmatprep.subr.mxu0 0.0
        %488 = vmatpush1.xpose.msra.mxu0 0.0
        %489 = vmatprep.subr.mxu0 0.0
        %490 = vmatpush1.xpose.msra.mxu0 0.0
        %491 = vmatprep.subr.mxu0 0.0
        %492 = vmatpush1.xpose.msra.mxu0 0.0
        %493 = vmatprep.subr.mxu0 0.0
        %494 = vmatpush1.xpose.msra.mxu0 0.0
        %495 = vmatprep.subr.mxu0 0.0
        %496 = vmatpush1.xpose.msra.mxu0 0.0
        %497 = vmatprep.subr.mxu0 0.0
        %498 = vmatpush1.xpose.msra.mxu0 0.0
        %499 = vmatprep.subr.mxu0 0.0
        %500 = vmatpush1.xpose.msra.mxu0 0.0
        %501 = vmatprep.subr.mxu0 0.0
        %502 = vmatpush1.xpose.msra.mxu0 0.0
        %503 = vmatprep.subr.mxu0 0.0
        %504 = vmatpush1.xpose.msra.mxu0 0.0
        %505 = vmatprep.subr.mxu0 0.0
        %506 = vmatpush1.xpose.msra.mxu0 0.0
        %507 = vmatprep.subr.mxu0 0.0
        %508 = vmatpush1.xpose.msra.mxu0 0.0
        %509 = vmatprep.subr.mxu0 0.0
        %510 = vmatpush1.xpose.msra.mxu0 0.0
        %511 = vmatprep.subr.mxu0 0.0
        %512 = vmatpush1.xpose.msra.mxu0 0.0
        %513 = vmatprep.subr.mxu0 0.0
        %514 = vmatpush1.xpose.msra.mxu0 0.0
        %515 = vmatprep.subr.mxu0 0.0
        %516 = vmatpush1.xpose.msra.mxu0 0.0
        %517 = vmatprep.subr.mxu0 0.0
        %518 = vmatpush1.xpose.msra.mxu0 0.0
        %519 = vmatprep.subr.mxu0 0.0
        %520 = vmatpush1.xpose.msra.mxu0 0.0
        %521 = vmatprep.subr.mxu0 0.0
        %522 = vmatpush1.xpose.msra.mxu0 0.0
        %523 = vmatprep.mubr.f32.mxu0 0.0
        %524 = vmatmul.mubr.f32.gmra.mrb[0].mxu0 %v455
        %v525 = vpop.f32.mrb[0].mxu0
        %v526 = vadd.f32 %v370, %v525
        %v527 = vpop.f32.mrb[0].mxu0
        %528 = vdwg.mxu0
        %vm529 = vcmask 64512
        %v530 = vsel %vm529, %v526, -inf
        %531 = vmax.xlane.f32.xlu0 %v530
        %v532 = vpop.xlane.xlu0 %531
        %v533 = vsub.f32 %v526, %v532
        %v534 = vmul.f32 %v533, 1.442695
        %v535 = vpow.pop %v534
        %v536 = vsel %vm529, %v535, 0.0
        %537 = vadd.xlane.f32.xlu0 %v536
        %v538 = vpop.xlane.xlu0 %537
        %v539 = vrcp.pop %v538
        %v540 = vmul.f32 %v535, %v539
        %541 = vrot.lane.b32.xlu0 %v449, 82
        %v542 = vpop.permute.xlu0 %541
        %v545 = vsel %vm529, %v540, 0
        %547 = vmatprep.subr.mxu0 0.0
        %548 = vmatpush1.msra.mxu0 %v542
        %549 = vmatprep.subr.mxu0 0.0
        %550 = vmatpush1.msra.mxu0 0.0
        %551 = vmatprep.subr.mxu0 0.0
        %552 = vmatpush1.msra.mxu0 0.0
        %553 = vmatprep.subr.mxu0 0.0
        %554 = vmatpush1.msra.mxu0 0.0
        %555 = vmatprep.subr.mxu0 0.0
        %556 = vmatpush1.msra.mxu0 0.0
        %557 = vmatprep.subr.mxu0 0.0
        %558 = vmatpush1.msra.mxu0 0.0
        %559 = vmatprep.subr.mxu0 0.0
        %560 = vmatpush1.msra.mxu0 0.0
        %561 = vmatprep.subr.mxu0 0.0
        %562 = vmatpush1.msra.mxu0 0.0
        %563 = vmatprep.subr.mxu0 0.0
        %564 = vmatpush1.msra.mxu0 0.0
        %565 = vmatprep.subr.mxu0 0.0
        %566 = vmatpush1.msra.mxu0 0.0
        %567 = vmatprep.subr.mxu0 0.0
        %568 = vmatpush1.msra.mxu0 0.0
        %569 = vmatprep.subr.mxu0 0.0
        %570 = vmatpush1.msra.mxu0 0.0
        %571 = vmatprep.subr.mxu0 0.0
        %572 = vmatpush1.msra.mxu0 0.0
        %573 = vmatprep.subr.mxu0 0.0
        %574 = vmatpush1.msra.mxu0 0.0
        %575 = vmatprep.subr.mxu0 0.0
        %576 = vmatpush1.msra.mxu0 0.0
        %577 = vmatprep.subr.mxu0 0.0
        %578 = vmatpush1.msra.mxu0 0.0
        %579 = vmatprep.subr.mxu0 0.0
        %580 = vmatpush1.msra.mxu0 0.0
        %581 = vmatprep.subr.mxu0 0.0
        %582 = vmatpush1.msra.mxu0 0.0
        %583 = vmatprep.subr.mxu0 0.0
        %584 = vmatpush1.msra.mxu0 0.0
        %585 = vmatprep.subr.mxu0 0.0
        %586 = vmatpush1.msra.mxu0 0.0
        %587 = vmatprep.subr.mxu0 0.0
        %588 = vmatpush1.msra.mxu0 0.0
        %589 = vmatprep.subr.mxu0 0.0
        %590 = vmatpush1.msra.mxu0 0.0
        %591 = vmatprep.subr.mxu0 0.0
        %592 = vmatpush1.msra.mxu0 0.0
        %593 = vmatprep.subr.mxu0 0.0
        %594 = vmatpush1.msra.mxu0 0.0
        %595 = vmatprep.subr.mxu0 0.0
        %596 = vmatpush1.msra.mxu0 0.0
        %597 = vmatprep.subr.mxu0 0.0
        %598 = vmatpush1.msra.mxu0 0.0
        %599 = vmatprep.subr.mxu0 0.0
        %600 = vmatpush1.msra.mxu0 0.0
        %601 = vmatprep.subr.mxu0 0.0
        %602 = vmatpush1.msra.mxu0 0.0
        %603 = vmatprep.subr.mxu0 0.0
        %604 = vmatpush1.msra.mxu0 0.0
        %605 = vmatprep.subr.mxu0 0.0
        %606 = vmatpush1.msra.mxu0 0.0
        %607 = vmatprep.subr.mxu0 0.0
        %608 = vmatpush1.msra.mxu0 0.0
        %609 = vmatprep.subr.mxu0 0.0
        %610 = vmatpush1.msra.mxu0 0.0
        %611 = vmatprep.mubr.f32.mxu0 0.0
        %612 = vmatmul.mubr.f32.gmra.mrb[0].mxu0 %v545
        %v613 = vpop.f32.mrb[0].mxu0
        %v614 = vadd.f32 0.0, %v613
        %v615 = vpop.f32.mrb[0].mxu0
        %616 = vdwg.mxu0
        %v617 = vld [vmem:[%s3] sm:$0xff]
        %v618 = vld [vmem:[%s3 + $0x8] sm:$0xff]
        %v619 = vld [vmem:[%s3 + $0x10] sm:$0x7f]
        %v620 = vld [vmem:[%s4] sm:$0x1]
        %v622 = vlaneseq
        %v623 = vshrl.u32 %v622, 7
        %v624 = vsub.s32 0, %v623
        %v625 = vrot.slane %v620, %v624
        %v628 = vsel %vm374, %v614, 0
        %v631 = vsel %vm378, %v619, 0
        %633 = vmatprep.subr.mxu0 0.0
        %634 = vmatpush1.msra.mxu0 %v617
        %635 = vmatprep.subr.mxu0 0.0
        %636 = vmatpush1.msra.mxu0 %v618
        %637 = vmatprep.subr.mxu0 0.0
        %638 = vmatpush1.msra.mxu0 %v631
        %639 = vmatprep.subr.mxu0 0.0
        %640 = vmatpush1.msra.mxu0 0.0
        %641 = vmatprep.subr.mxu0 0.0
        %642 = vmatpush1.msra.mxu0 0.0
        %643 = vmatprep.subr.mxu0 0.0
        %644 = vmatpush1.msra.mxu0 0.0
        %645 = vmatprep.subr.mxu0 0.0
        %646 = vmatpush1.msra.mxu0 0.0
        %647 = vmatprep.subr.mxu0 0.0
        %648 = vmatpush1.msra.mxu0 0.0
        %649 = vmatprep.subr.mxu0 0.0
        %650 = vmatpush1.msra.mxu0 0.0
        %651 = vmatprep.subr.mxu0 0.0
        %652 = vmatpush1.msra.mxu0 0.0
        %653 = vmatprep.subr.mxu0 0.0
        %654 = vmatpush1.msra.mxu0 0.0
        %655 = vmatprep.subr.mxu0 0.0
        %656 = vmatpush1.msra.mxu0 0.0
        %657 = vmatprep.subr.mxu0 0.0
        %658 = vmatpush1.msra.mxu0 0.0
        %659 = vmatprep.subr.mxu0 0.0
        %660 = vmatpush1.msra.mxu0 0.0
        %661 = vmatprep.subr.mxu0 0.0
        %662 = vmatpush1.msra.mxu0 0.0
        %663 = vmatprep.subr.mxu0 0.0
        %664 = vmatpush1.msra.mxu0 0.0
        %665 = vmatprep.subr.mxu0 0.0
        %666 = vmatpush1.msra.mxu0 0.0
        %667 = vmatprep.subr.mxu0 0.0
        %668 = vmatpush1.msra.mxu0 0.0
        %669 = vmatprep.subr.mxu0 0.0
        %670 = vmatpush1.msra.mxu0 0.0
        %671 = vmatprep.subr.mxu0 0.0
        %672 = vmatpush1.msra.mxu0 0.0
        %673 = vmatprep.subr.mxu0 0.0
        %674 = vmatpush1.msra.mxu0 0.0
        %675 = vmatprep.subr.mxu0 0.0
        %676 = vmatpush1.msra.mxu0 0.0
        %677 = vmatprep.subr.mxu0 0.0
        %678 = vmatpush1.msra.mxu0 0.0
        %679 = vmatprep.subr.mxu0 0.0
        %680 = vmatpush1.msra.mxu0 0.0
        %681 = vmatprep.subr.mxu0 0.0
        %682 = vmatpush1.msra.mxu0 0.0
        %683 = vmatprep.subr.mxu0 0.0
        %684 = vmatpush1.msra.mxu0 0.0
        %685 = vmatprep.subr.mxu0 0.0
        %686 = vmatpush1.msra.mxu0 0.0
        %687 = vmatprep.subr.mxu0 0.0
        %688 = vmatpush1.msra.mxu0 0.0
        %689 = vmatprep.subr.mxu0 0.0
        %690 = vmatpush1.msra.mxu0 0.0
        %691 = vmatprep.subr.mxu0 0.0
        %692 = vmatpush1.msra.mxu0 0.0
        %693 = vmatprep.subr.mxu0 0.0
        %694 = vmatpush1.msra.mxu0 0.0
        %695 = vmatprep.subr.mxu0 0.0
        %696 = vmatpush1.msra.mxu0 0.0
        %697 = vmatprep.mubr.f32.mxu0 0.0
        %698 = vmatmul.mubr.f32.gmra.mrb[0].mxu0 %v628
        %v699 = vpop.f32.mrb[0].mxu0
        %v700 = vadd.f32 %v625, %v699
        %v701 = vpop.f32.mrb[0].mxu0
        %702 = vdwg.mxu0
        %v703 = vmax.f32 %v700, 0.0
        %v704 = vld [vmem:[%s5] sm:$0xff]
        %v705 = vld [vmem:[%s5 + $0x8] sm:$0xff]
        %v706 = vld [vmem:[%s5 + $0x10] sm:$0xff]
        %v707 = vld [vmem:[%s5 + $0x18] sm:$0xff]
        %v708 = vld [vmem:[%s6] sm:$0x1]
        %v710 = vlaneseq
        %v711 = vshrl.u32 %v710, 7
        %v712 = vsub.s32 0, %v711
        %v713 = vrot.slane %v708, %v712
        %vm715 = vcmask 261120
        %v717 = vsel %vm715, %v703, 0
        %719 = vmatprep.subr.mxu0 0.0
        %720 = vmatpush1.msra.mxu0 %v704
        %721 = vmatprep.subr.mxu0 0.0
        %722 = vmatpush1.msra.mxu0 %v705
        %723 = vmatprep.subr.mxu0 0.0
        %724 = vmatpush1.msra.mxu0 %v706
        %725 = vmatprep.subr.mxu0 0.0
        %726 = vmatpush1.msra.mxu0 %v707
        %727 = vmatprep.subr.mxu0 0.0
        %728 = vmatpush1.msra.mxu0 0.0
        %729 = vmatprep.subr.mxu0 0.0
        %730 = vmatpush1.msra.mxu0 0.0
        %731 = vmatprep.subr.mxu0 0.0
        %732 = vmatpush1.msra.mxu0 0.0
        %733 = vmatprep.subr.mxu0 0.0
        %734 = vmatpush1.msra.mxu0 0.0
        %735 = vmatprep.subr.mxu0 0.0
        %736 = vmatpush1.msra.mxu0 0.0
        %737 = vmatprep.subr.mxu0 0.0
        %738 = vmatpush1.msra.mxu0 0.0
        %739 = vmatprep.subr.mxu0 0.0
        %740 = vmatpush1.msra.mxu0 0.0
        %741 = vmatprep.subr.mxu0 0.0
        %742 = vmatpush1.msra.mxu0 0.0
        %743 = vmatprep.subr.mxu0 0.0
        %744 = vmatpush1.msra.mxu0 0.0
        %745 = vmatprep.subr.mxu0 0.0
        %746 = vmatpush1.msra.mxu0 0.0
        %747 = vmatprep.subr.mxu0 0.0
        %748 = vmatpush1.msra.mxu0 0.0
        %749 = vmatprep.subr.mxu0 0.0
        %750 = vmatpush1.msra.mxu0 0.0
        %751 = vmatprep.subr.mxu0 0.0
        %752 = vmatpush1.msra.mxu0 0.0
        %753 = vmatprep.subr.mxu0 0.0
        %754 = vmatpush1.msra.mxu0 0.0
        %755 = vmatprep.subr.mxu0 0.0
        %756 = vmatpush1.msra.mxu0 0.0
        %757 = vmatprep.subr.mxu0 0.0
        %758 = vmatpush1.msra.mxu0 0.0
        %759 = vmatprep.subr.mxu0 0.0
        %760 = vmatpush1.msra.mxu0 0.0
        %761 = vmatprep.subr.mxu0 0.0
        %762 = vmatpush1.msra.mxu0 0.0
        %763 = vmatprep.subr.mxu0 0.0
        %764 = vmatpush1.msra.mxu0 0.0
        %765 = vmatprep.subr.mxu0 0.0
        %766 = vmatpush1.msra.mxu0 0.0
        %767 = vmatprep.subr.mxu0 0.0
        %768 = vmatpush1.msra.mxu0 0.0
        %769 = vmatprep.subr.mxu0 0.0
        %770 = vmatpush1.msra.mxu0 0.0
        %771 = vmatprep.subr.mxu0 0.0
        %772 = vmatpush1.msra.mxu0 0.0
        %773 = vmatprep.subr.mxu0 0.0
        %774 = vmatpush1.msra.mxu0 0.0
        %775 = vmatprep.subr.mxu0 0.0
        %776 = vmatpush1.msra.mxu0 0.0
        %777 = vmatprep.subr.mxu0 0.0
        %778 = vmatpush1.msra.mxu0 0.0
        %779 = vmatprep.subr.mxu0 0.0
        %780 = vmatpush1.msra.mxu0 0.0
        %781 = vmatprep.subr.mxu0 0.0
        %782 = vmatpush1.msra.mxu0 0.0
        %783 = vmatprep.mubr.f32.mxu0 0.0
        %784 = vmatmul.mubr.f32.gmra.mrb[0].mxu0 %v717
        %v785 = vpop.f32.mrb[0].mxu0
        %v786 = vadd.f32 %v713, %v785
        %v787 = vpop.f32.mrb[0].mxu0
        %788 = vdwg.mxu0
        %v789 = vadd.f32 %v369, %v786
        %790 = vst.msk [vmem:[%s361] sm:$0xff] %vm374, %v789
        %791 = vst.msk [vmem:[%s368] sm:$0xff] %vm529, %v526
        %s792 = sand.u32 %s197, 1
        %s793 = scalar_lea.sflag [#allocation4], %s792
        %s794 = sand.u32 %s197, 1
        %s795 = smul.addr %s794, 8
        %s796 = scalar_lea.vmem [#allocation7], %s795
        %s797 = sand.u32 %s223, 1
        %s798 = scalar_lea.sflag [#allocation9], %s797
        %s799 = sand.u32 %s223, 1
        %s800 = smul.addr %s799, 8
        %s801 = scalar_lea.vmem [#allocation8], %s800
        // Predicated region
        $region57: #{graph_nca_forward_batched.1} parent=47 // pred_check
          %p802 = pneg %p207
        $region58: #{graph_nca_forward_batched.1} parent=47 // pred_check_branch
          %804 = sbr.rel (%p802) target = $region60
        $region59: #{graph_nca_forward_batched.1} parent=47 // pred_region
          %s806 = ssub.s32 128, 128
          %807 = vsyncadd %s793, %s806
          %s808 = smul.addr %s32, 128
          %s809 = scalar_lea.hbm %s7, %s808
          %s811 = sshll.u32 %s796, 4
          %s812 = int_to_ptr.vmem [resolvable:$true] %s811
          %814 = dma.vmem_to_hbm [thread:$0]  %s812, 128, %s809, %s793
        $region60: #{graph_nca_forward_batched.1} parent=47 // pred_fallthru
          _
        // Predicated region
        $region61: #{graph_nca_forward_batched.1} parent=47 // pred_check
          %p815 = pneg %p233
        $region62: #{graph_nca_forward_batched.1} parent=47 // pred_check_branch
          %817 = sbr.rel (%p815) target = $region64
        $region63: #{graph_nca_forward_batched.1} parent=47 // pred_region
          %s819 = ssub.s32 128, 128
          %820 = vsyncadd %s798, %s819
          %s821 = smul.addr %s32, 128
          %s822 = scalar_lea.hbm %s8, %s821
          %s824 = sshll.u32 %s801, 4
          %s825 = int_to_ptr.vmem [resolvable:$true] %s824
          %827 = dma.vmem_to_hbm [thread:$0]  %s825, 128, %s822, %s798
        $region64: #{graph_nca_forward_batched.1} parent=47 // pred_fallthru
          _
      $region48: #{graph_nca_forward_batched.1} parent=5 // pred_fallthru
        _
      %p828 = scmp.le.s32.totalorder 2, %s27
      // Predicated region
      $region65: #{graph_nca_forward_batched.1} parent=5 // pred_check
        %p829 = pneg %p828
      $region66: #{graph_nca_forward_batched.1} parent=5 // pred_check_branch
        %831 = sbr.rel (%p829) target = $region68
      $region67: #{graph_nca_forward_batched.1} parent=5 // pred_region
        %s832 = ssub.s32 %s27, 2
        // Predicated region
        $region69: #{graph_nca_forward_batched.1} parent=67 // pred_check
          %p833 = pneg %p213
        $region70: #{graph_nca_forward_batched.1} parent=67 // pred_check_branch
          %835 = sbr.rel (%p833) target = $region72
        $region71: #{graph_nca_forward_batched.1} parent=67 // pred_region
          %s836 = sand.u32 %s198, 1
          %s837 = scalar_lea.sflag [#allocation4], %s836
          %s838 = sand.u32 %s198, 1
          %s839 = smul.addr %s838, 8
          %s840 = scalar_lea.vmem [#allocation7], %s839
          %841 = dma.done %s837, 128
        $region72: #{graph_nca_forward_batched.1} parent=67 // pred_fallthru
          _
        // Predicated region
        $region73: #{graph_nca_forward_batched.1} parent=67 // pred_check
          %p842 = pneg %p239
        $region74: #{graph_nca_forward_batched.1} parent=67 // pred_check_branch
          %844 = sbr.rel (%p842) target = $region76
        $region75: #{graph_nca_forward_batched.1} parent=67 // pred_region
          %s845 = sand.u32 %s224, 1
          %s846 = scalar_lea.sflag [#allocation9], %s845
          %s847 = sand.u32 %s224, 1
          %s848 = smul.addr %s847, 8
          %s849 = scalar_lea.vmem [#allocation8], %s848
          %850 = dma.done %s846, 128
        $region76: #{graph_nca_forward_batched.1} parent=67 // pred_fallthru
          _
      $region68: #{graph_nca_forward_batched.1} parent=5 // pred_fallthru
        _
    $region6: #{graph_nca_forward_batched.1} parent=1 // loop_footer
      %s31 = sadd.s32 1, %s27
    $region7: #{graph_nca_forward_batched.1} parent=1 // loop_footer_branch
      %26 = sbr.rel target = $region3
    $region8: #{graph_nca_forward_batched.1} parent=1 // loop_exit
      _
    %851 = vsyncpa [#allocation3], 1
    %s852 = scalar_lea.sflag [#allocation3], 1
    %853 = vsyncpa %s852, 1
    %854 = vsyncpa [#allocation6], 1
    %s855 = scalar_lea.sflag [#allocation6], 1
    %856 = vsyncpa %s855, 1
    %857 = vsyncpa [#allocation4], 1
    %s858 = scalar_lea.sflag [#allocation4], 1
    %859 = vsyncpa %s858, 1
    %860 = vsyncpa [#allocation9], 1
    %s861 = scalar_lea.sflag [#allocation9], 1
    %862 = vsyncpa %s861, 1

</llo_original>
